<compile_context>
chip_gen: v5e
topology: v5e:2x2
jax: 0.10.0
libtpu: 0.0.40
codegen_flags: <defaults>
</compile_context>

<pallas_src>
import jax
import jax.numpy as jnp
from jax.experimental import pallas as pl
from jax.experimental.pallas import tpu as pltpu


_LANES = 1024          # lane-dense slab width (multiple of 128)
_MAX_BLOCK_ROWS = 512  # 512 x 1024 f32 block = 2 MiB; <= 12 MiB double-buffered I/O


def _sign_kernel(x_ref, o_ref):
    x = x_ref[...].astype(jnp.float32)
    # torch.sign: -1 / 0 / +1
    s = jnp.where(x > 0.0, 1.0, jnp.where(x < 0.0, -1.0, 0.0))
    o_ref[...] = s.astype(o_ref.dtype)


def _bireal_grad_kernel(x_ref, g_ref, o_ref):
    # d(out3)/dx of the BiReal surrogate (this is the gradient of the module
    # output thanks to the detach trick):
    #   x <  -1 : 0
    #   -1 <= x < 0 : 2x + 2
    #   0 <= x < 1 : -2x + 2
    #   x >=  1 : 0
    x = x_ref[...].astype(jnp.float32)
    g = g_ref[...].astype(jnp.float32)
    inside = jnp.logical_and(x >= -1.0, x < 1.0).astype(jnp.float32)
    slope = jnp.where(x < 0.0, 2.0 * x + 2.0, -2.0 * x + 2.0)
    o_ref[...] = (g * slope * inside).astype(o_ref.dtype)


def _elementwise_pallas(kernel, out_dtype, *arrays):
    """Apply an elementwise Pallas kernel to same-shaped arrays of any shape."""
    shape = arrays[0].shape
    total = arrays[0].size
    lanes = _LANES

    rows = pl.cdiv(total, lanes)
    if rows < _MAX_BLOCK_ROWS:
        # single block covering everything; sublane dim a multiple of 8
        block_rows = max(8, pl.cdiv(rows, 8) * 8)
        padded_rows = block_rows
    else:
        block_rows = _MAX_BLOCK_ROWS
        padded_rows = pl.cdiv(rows, block_rows) * block_rows
    padded_total = padded_rows * lanes

    def to_slab(a):
        flat = a.reshape(-1)
        if padded_total != total:
            flat = jnp.pad(flat, (0, padded_total - total))
        return flat.reshape(padded_rows, lanes)

    slabs = [to_slab(a) for a in arrays]
    spec = pl.BlockSpec((block_rows, lanes), lambda i: (i, 0))

    out = pl.pallas_call(
        kernel,
        out_shape=jax.ShapeDtypeStruct((padded_rows, lanes), out_dtype),
        grid_spec=pltpu.PrefetchScalarGridSpec(
            num_scalar_prefetch=0,
            grid=(padded_rows // block_rows,),
            in_specs=[spec] * len(slabs),
            out_specs=spec,
        ),
        compiler_params=pltpu.CompilerParams(
            dimension_semantics=("parallel",),
            vmem_limit_bytes=32 << 20,
        ),
    )(*slabs)

    flat = out.reshape(-1)
    if padded_total != total:
        flat = flat[:total]
    return flat.reshape(shape)


@jax.custom_vjp
def bin_active_bireal(x: jax.Array) -> jax.Array:
    """BiReal binary activation. Forward value == sign(x), any input shape."""
    return _elementwise_pallas(_sign_kernel, x.dtype, x)


def _bin_active_fwd(x):
    return bin_active_bireal(x), x


def _bin_active_bwd(x, g):
    return (_elementwise_pallas(_bireal_grad_kernel, x.dtype, x, g),)


bin_active_bireal.defvjp(_bin_active_fwd, _bin_active_bwd)


def _reference(x):
    # Pure-JAX mirror of the PyTorch forward (stop_gradient == detach).
    out_forward = jnp.sign(x)
    mask1 = (x < -1.0).astype(jnp.float32)
    mask2 = (x < 0.0).astype(jnp.float32)
    mask3 = (x < 1.0).astype(jnp.float32)
    out1 = -1.0 * mask1 + (x * x + 2.0 * x) * (1.0 - mask1)
    out2 = out1 * mask2 + (-x * x + 2.0 * x) * (1.0 - mask2)
    out3 = out2 * mask3 + 1.0 * (1.0 - mask3)
    return jax.lax.stop_gradient(out_forward) - jax.lax.stop_gradient(out3) + out3


if __name__ == "__main__":
    key = jax.random.PRNGKey(0)
    # NCHW input, small shape consistent with a conv-activation use-site
    x = jax.random.normal(key, (2, 4, 16, 16), dtype=jnp.float32) * 2.0

    out = jax.block_until_ready(bin_active_bireal(x))
    ref = _reference(x)

    assert out.shape == x.shape and out.dtype == x.dtype
    assert jnp.allclose(out, ref, atol=1e-5), "forward mismatch vs reference"

    # gradient check: detach trick means d(out)/dx == d(out3)/dx
    g = jax.block_until_ready(jax.grad(lambda v: jnp.sum(bin_active_bireal(v)))(x))
    g_ref = jax.grad(lambda v: jnp.sum(_reference(v)))(x)
    assert jnp.allclose(g, g_ref, atol=1e-5), "gradient mismatch vs reference"

    print("KERNEL_OK")
</pallas_src>

<mosaic_0001>
module attributes {stable_mosaic.version = 11 : i64} {
  func.func @_sign_kernel(%arg0: i32, %arg1: memref<8x1024xf32, #tpu.memory_space<vmem>>, %arg2: memref<8x1024xf32, #tpu.memory_space<vmem>>) attributes {dimension_semantics = [#tpu.dimension_semantics<parallel>], iteration_bounds = array<i64: 1>, scalar_prefetch = 0 : i64, scratch_operands = 0 : i64, tpu.core_type = #tpu.core_type<tc>, window_params = [{transform_indices = @transform_0, window_bounds = array<i64: 8, 1024>}, {transform_indices = @transform_1, window_bounds = array<i64: 8, 1024>}]} {
    %c0 = arith.constant 0 : index
    %c0_0 = arith.constant 0 : index
    %0 = vector.load %arg1[%c0, %c0_0] : memref<8x1024xf32, #tpu.memory_space<vmem>>, vector<8x1024xf32>
    %cst = arith.constant 0.000000e+00 : f32
    %1 = vector.broadcast %cst : f32 to vector<8x1024xf32>
    %2 = arith.cmpf ogt, %0, %1 : vector<8x1024xf32>
    %cst_1 = arith.constant 0.000000e+00 : f32
    %3 = vector.broadcast %cst_1 : f32 to vector<8x1024xf32>
    %4 = arith.cmpf olt, %0, %3 : vector<8x1024xf32>
    %cst_2 = arith.constant -1.000000e+00 : f32
    %cst_3 = arith.constant 0.000000e+00 : f32
    %5 = vector.broadcast %cst_2 : f32 to vector<8x1024xf32>
    %6 = vector.broadcast %cst_3 : f32 to vector<8x1024xf32>
    %7 = arith.select %4, %5, %6 : vector<8x1024xi1>, vector<8x1024xf32>
    %cst_4 = arith.constant 1.000000e+00 : f32
    %8 = vector.broadcast %cst_4 : f32 to vector<8x1024xf32>
    %9 = arith.select %2, %8, %7 : vector<8x1024xi1>, vector<8x1024xf32>
    %c0_5 = arith.constant 0 : index
    %c0_6 = arith.constant 0 : index
    %10 = vector.load %arg2[%c0_5, %c0_6] : memref<8x1024xf32, #tpu.memory_space<vmem>>, vector<8x1024xf32>
    tpu.vector_store %arg2[%c0_5, %c0_6], %9 {strides = array<i32>} : memref<8x1024xf32, #tpu.memory_space<vmem>>, vector<8x1024xf32>,
    return
  }
  func.func @transform_0(%arg0: i32) -> (i32, i32) {
    %c0_i32 = arith.constant 0 : i32
    %c0_i32_0 = arith.constant 0 : i32
    return %arg0, %c0_i32 : i32, i32
  }
  func.func @transform_1(%arg0: i32) -> (i32, i32) {
    %c0_i32 = arith.constant 0 : i32
    %c0_i32_0 = arith.constant 0 : i32
    return %arg0, %c0_i32 : i32, i32
  }
}

</mosaic_0001>

<llo_original>
// kernel: tpu_custom_call.1
$region0: #{tpu_custom_call.1}
  #allocation0 [shape = 'u32[]', space=smem, size = 0x4, offset = 0x4, fixed_abs, tag = 'smem constant byte address 0x4 - core index']
  #allocation1 [shape = 'u32[72,128]{1,0:T(1,128)}', space=vmem, size = 0x9000, scoped, tag = 'internal scratch']
  %s0 = inlined_call_operand.hbm [shape: f32[8,1024], index: 0, kind: input, shape index: {}]
  %s1 = inlined_call_operand.hbm [shape: f32[8,1024], index: 1, kind: output, shape index: {}]
  %s2 = sld [smem:[#allocation0]]
  $region18: #{tpu_custom_call.1} parent=0
    _
  %s4 = ssub.s32 1, %s2
  %s5 = scalar_select 0, %s4, %s2
  $region1: #{tpu_custom_call.1} parent=0
    #allocation2 [shape = 'u8[32768]{0}', space=vmem, size = 0x8000, scoped, tag = 'input window, operand 0, single buffered']
    #allocation3 [shape = 's32[1]{0}', space=sflag, size = 0x4, scoped, tag = 'scoped memory for tpu_custom_call.1']
    #allocation4 [shape = 's32[1]{0}', space=sflag, size = 0x4, scoped, tag = 'scoped memory for tpu_custom_call.1']
    #allocation5 [shape = 'u8[32768]{0}', space=vmem, size = 0x8000, scoped, tag = 'output window, operand 0, single buffered']
    %6 = vsyncpa [#allocation3], 0
    %7 = vsyncpa [#allocation4], 0
    // Predicated region
    $region2: #{tpu_custom_call.1} parent=1 // pred_check
      _
    $region3: #{tpu_custom_call.1} parent=1 // pred_check_branch
      %9 = sbr.rel (0) target = $region5
    $region4: #{tpu_custom_call.1} parent=1 // pred_region
      %11 = vsyncadd [#allocation3], 0
      %s13 = sshll.u32 %s0, 4
      %s14 = int_to_ptr.hbm [resolvable:$true] %s13
      %s15 = sshll.u32 [#allocation2], 4
      %s16 = int_to_ptr.vmem [resolvable:$true] %s15
      %18 = dma.hbm_to_vmem [thread:$0]  %s14, 1024, %s16, [#allocation3]
    $region5: #{tpu_custom_call.1} parent=1 // pred_fallthru
      _
    // Predicated region
    $region6: #{tpu_custom_call.1} parent=1 // pred_check
      _
    $region7: #{tpu_custom_call.1} parent=1 // pred_check_branch
      %20 = sbr.rel (0) target = $region9
    $region8: #{tpu_custom_call.1} parent=1 // pred_region
      %22 = dma.done [#allocation3], 1024
    $region9: #{tpu_custom_call.1} parent=1 // pred_fallthru
      _
    %v23 = vld [vmem:[#allocation2] sm:$0xff]
    %v24 = vld [vmem:[#allocation2 + $0x8] sm:$0xff]
    %v25 = vld [vmem:[#allocation2 + $0x10] sm:$0xff]
    %v26 = vld [vmem:[#allocation2 + $0x18] sm:$0xff]
    %v27 = vld [vmem:[#allocation2 + $0x20] sm:$0xff]
    %v28 = vld [vmem:[#allocation2 + $0x28] sm:$0xff]
    %v29 = vld [vmem:[#allocation2 + $0x30] sm:$0xff]
    %v30 = vld [vmem:[#allocation2 + $0x38] sm:$0xff]
    %vm31 = vcmp.gt.f32.partialorder %v23, 0.0
    %vm32 = vcmp.gt.f32.partialorder %v24, 0.0
    %vm33 = vcmp.gt.f32.partialorder %v25, 0.0
    %vm34 = vcmp.gt.f32.partialorder %v26, 0.0
    %vm35 = vcmp.gt.f32.partialorder %v27, 0.0
    %vm36 = vcmp.gt.f32.partialorder %v28, 0.0
    %vm37 = vcmp.gt.f32.partialorder %v29, 0.0
    %vm38 = vcmp.gt.f32.partialorder %v30, 0.0
    %vm39 = vcmp.lt.f32.partialorder %v23, 0.0
    %vm40 = vcmp.lt.f32.partialorder %v24, 0.0
    %vm41 = vcmp.lt.f32.partialorder %v25, 0.0
    %vm42 = vcmp.lt.f32.partialorder %v26, 0.0
    %vm43 = vcmp.lt.f32.partialorder %v27, 0.0
    %vm44 = vcmp.lt.f32.partialorder %v28, 0.0
    %vm45 = vcmp.lt.f32.partialorder %v29, 0.0
    %vm46 = vcmp.lt.f32.partialorder %v30, 0.0
    %v47 = vsel %vm39, -1.0, 0.0
    %v48 = vsel %vm40, -1.0, 0.0
    %v49 = vsel %vm41, -1.0, 0.0
    %v50 = vsel %vm42, -1.0, 0.0
    %v51 = vsel %vm43, -1.0, 0.0
    %v52 = vsel %vm44, -1.0, 0.0
    %v53 = vsel %vm45, -1.0, 0.0
    %v54 = vsel %vm46, -1.0, 0.0
    %v55 = vsel %vm31, 1.0, %v47
    %v56 = vsel %vm32, 1.0, %v48
    %v57 = vsel %vm33, 1.0, %v49
    %v58 = vsel %vm34, 1.0, %v50
    %v59 = vsel %vm35, 1.0, %v51
    %v60 = vsel %vm36, 1.0, %v52
    %v61 = vsel %vm37, 1.0, %v53
    %v62 = vsel %vm38, 1.0, %v54
    %63 = vst [vmem:[#allocation5] sm:$0xff] %v55
    %64 = vst [vmem:[#allocation5 + $0x8] sm:$0xff] %v56
    %65 = vst [vmem:[#allocation5 + $0x10] sm:$0xff] %v57
    %66 = vst [vmem:[#allocation5 + $0x18] sm:$0xff] %v58
    %67 = vst [vmem:[#allocation5 + $0x20] sm:$0xff] %v59
    %68 = vst [vmem:[#allocation5 + $0x28] sm:$0xff] %v60
    %69 = vst [vmem:[#allocation5 + $0x30] sm:$0xff] %v61
    %70 = vst [vmem:[#allocation5 + $0x38] sm:$0xff] %v62
    // Predicated region
    $region10: #{tpu_custom_call.1} parent=1 // pred_check
      _
    $region11: #{tpu_custom_call.1} parent=1 // pred_check_branch
      %72 = sbr.rel (0) target = $region13
    $region12: #{tpu_custom_call.1} parent=1 // pred_region
      %74 = vsyncadd [#allocation4], 0
      %s76 = sshll.u32 [#allocation5], 4
      %s77 = int_to_ptr.vmem [resolvable:$true] %s76
      %s78 = sshll.u32 %s1, 4
      %s79 = int_to_ptr.hbm [resolvable:$true] %s78
      %81 = dma.vmem_to_hbm [thread:$0]  %s77, 1024, %s79, [#allocation4]
    $region13: #{tpu_custom_call.1} parent=1 // pred_fallthru
      _
    // Predicated region
    $region14: #{tpu_custom_call.1} parent=1 // pred_check
      _
    $region15: #{tpu_custom_call.1} parent=1 // pred_check_branch
      %83 = sbr.rel (0) target = $region17
    $region16: #{tpu_custom_call.1} parent=1 // pred_region
      %85 = dma.done [#allocation4], 1024
    $region17: #{tpu_custom_call.1} parent=1 // pred_fallthru
      _
    %86 = vsyncpa [#allocation3], 1
    %87 = vsyncpa [#allocation4], 1

</llo_original>
